<compile_context>
chip_gen: v7x
topology: tpu7x:2x2x1
jax: 0.10.0
libtpu: 0.0.40
codegen_flags: <defaults>
</compile_context>

<pallas_src>
import math

import jax
import jax.numpy as jnp
from jax.experimental import pallas as pl
from jax.experimental.pallas import tpu as pltpu

D_IN, D_H1, D_H2, D_OUT = 11, 22, 10, 1
_LANE = 128
_DEFAULT_TILE_B = 2048   # f32 x tile: (16 sublanes x 2048 lanes x 4B) = 128 KB,
                         # double-buffered -> far under every chip's VMEM limit.


def _mlp_kernel(x_ref, w1_ref, b1_ref, w2_ref, b2_ref, w3_ref, b3_ref, o_ref):
    # x_ref: (11, TILE_B) -- features on sublanes, batch on lanes.
    x = x_ref[...]
    z1 = jnp.dot(w1_ref[...], x, preferred_element_type=jnp.float32)    # (22, TB)
    z1 = jnp.maximum(z1 + b1_ref[...], 0.0)                             # ReLU
    z2 = jnp.dot(w2_ref[...], z1, preferred_element_type=jnp.float32)   # (10, TB)
    z2 = jnp.maximum(z2 + b2_ref[...], 0.0)                             # ReLU
    z3 = jnp.dot(w3_ref[...], z2, preferred_element_type=jnp.float32)   # (1, TB)
    o_ref[...] = (z3 + b3_ref[...]).astype(o_ref.dtype)


def _round_up(n, m):
    return ((n + m - 1) // m) * m


def _net_forward_impl(x, params):
    """x: (B, 11) float32. params: PyTorch-orientation weights (out, in),
    column-vector biases (out, 1). Returns (B, 1) float32."""
    B = x.shape[0]
    tile_b = min(_DEFAULT_TILE_B, _round_up(B, _LANE))
    b_pad = _round_up(B, tile_b)

    # Batch onto lanes; zero-pad batch to a multiple of TILE_B (padded columns
    # are computed but discarded -- harmless and cheap).
    x_t = jnp.pad(x.astype(jnp.float32).T, ((0, 0), (0, b_pad - B)))

    w1, b1 = params["w1"], params["b1"]   # (22, 11), (22, 1)
    w2, b2 = params["w2"], params["b2"]   # (10, 22), (10, 1)
    w3, b3 = params["w3"], params["b3"]   # (1, 10),  (1, 1)

    # Weights/biases: constant block index -> resident in VMEM across steps.
    resident = lambda a: pl.BlockSpec(a.shape, lambda i: (0, 0))

    y_t = pl.pallas_call(
        _mlp_kernel,
        out_shape=jax.ShapeDtypeStruct((D_OUT, b_pad), jnp.float32),
        grid=(b_pad // tile_b,),
        in_specs=[
            pl.BlockSpec((D_IN, tile_b), lambda i: (0, i)),   # streamed x tiles
            resident(w1), resident(b1),
            resident(w2), resident(b2),
            resident(w3), resident(b3),
        ],
        out_specs=pl.BlockSpec((D_OUT, tile_b), lambda i: (0, i)),  # lane-dense
        compiler_params=pltpu.CompilerParams(
            dimension_semantics=("parallel",),   # v7x: shard batch over 2 TCs
        ),
    )(x_t, w1, b1, w2, b2, w3, b3)

    return y_t[:, :B].T                                       # (B, 1)


net_forward = jax.jit(_net_forward_impl)


def xavier_uniform(key, fan_out, fan_in, dtype=jnp.float32):
    """Matches torch.nn.init.xavier_uniform_; PyTorch (out, in) orientation."""
    bound = math.sqrt(6.0 / (fan_in + fan_out))
    return jax.random.uniform(key, (fan_out, fan_in), dtype, -bound, bound)


def init_params(key):
    k1, k2, k3 = jax.random.split(key, 3)
    return {
        "w1": xavier_uniform(k1, D_H1, D_IN),
        "b1": jnp.zeros((D_H1, 1), jnp.float32),
        "w2": xavier_uniform(k2, D_H2, D_H1),
        "b2": jnp.zeros((D_H2, 1), jnp.float32),
        "w3": xavier_uniform(k3, D_OUT, D_H2),
        "b3": jnp.zeros((D_OUT, 1), jnp.float32),
    }


def net_forward_ref(x, p):
    """Pure-JAX reference matching the PyTorch forward (y = x @ W.T + b)."""
    z = jnp.maximum(x @ p["w1"].T + p["b1"].T, 0.0)
    z = jnp.maximum(z @ p["w2"].T + p["b2"].T, 0.0)
    return z @ p["w3"].T + p["b3"].T


if __name__ == "__main__":
    key = jax.random.PRNGKey(0)
    k_params, k_x = jax.random.split(key)

    params = init_params(k_params)
    x = jax.random.normal(k_x, (8, 11), jnp.float32)   # batch=8, features=11

    out = net_forward(x, params)
    out = jax.block_until_ready(out)

    ref = net_forward_ref(x, params)
    assert out.shape == (8, 1)
    assert jnp.allclose(out, ref, atol=1e-5, rtol=1e-5)

    print("KERNEL_OK")
</pallas_src>

<mosaic_0001>
module attributes {stable_mosaic.version = 11 : i64} {
  func.func @_mlp_kernel(%arg0: i32, %arg1: memref<11x128xf32, #tpu.memory_space<vmem>>, %arg2: memref<22x11xf32, #tpu.memory_space<vmem>>, %arg3: memref<22x1xf32, #tpu.memory_space<vmem>>, %arg4: memref<10x22xf32, #tpu.memory_space<vmem>>, %arg5: memref<10x1xf32, #tpu.memory_space<vmem>>, %arg6: memref<1x10xf32, #tpu.memory_space<vmem>>, %arg7: memref<1x1xf32, #tpu.memory_space<vmem>>, %arg8: memref<1x128xf32, #tpu.memory_space<vmem>>) attributes {dimension_semantics = [#tpu.dimension_semantics<parallel>], iteration_bounds = array<i64: 1>, scalar_prefetch = 0 : i64, scratch_operands = 0 : i64, tpu.core_type = #tpu.core_type<tc>, window_params = [{transform_indices = @transform_0, window_bounds = array<i64: 11, 128>}, {pipeline_mode = #tpu.pipeline_mode<synchronous>, transform_indices = @transform_1, window_bounds = array<i64: 22, 11>}, {pipeline_mode = #tpu.pipeline_mode<synchronous>, transform_indices = @transform_2, window_bounds = array<i64: 22, 1>}, {pipeline_mode = #tpu.pipeline_mode<synchronous>, transform_indices = @transform_3, window_bounds = array<i64: 10, 22>}, {pipeline_mode = #tpu.pipeline_mode<synchronous>, transform_indices = @transform_4, window_bounds = array<i64: 10, 1>}, {pipeline_mode = #tpu.pipeline_mode<synchronous>, transform_indices = @transform_5, window_bounds = array<i64: 1, 10>}, {pipeline_mode = #tpu.pipeline_mode<synchronous>, transform_indices = @transform_6, window_bounds = array<i64: 1, 1>}, {transform_indices = @transform_7, window_bounds = array<i64: 1, 128>}]} {
    %c0 = arith.constant 0 : index
    %c0_0 = arith.constant 0 : index
    %0 = vector.load %arg1[%c0, %c0_0] : memref<11x128xf32, #tpu.memory_space<vmem>>, vector<11x128xf32>
    %c0_1 = arith.constant 0 : index
    %c0_2 = arith.constant 0 : index
    %1 = vector.load %arg2[%c0_1, %c0_2] : memref<22x11xf32, #tpu.memory_space<vmem>>, vector<22x11xf32>
    %cst = arith.constant dense<0.000000e+00> : vector<22x128xf32>
    %2 = tpu.matmul %1, %0, %cst {dimension_numbers = #tpu.dot_dimension_numbers<[1], [0], [0], [1], [0, 0, 1, 1], [], []>} : vector<22x11xf32>, vector<11x128xf32>, vector<22x128xf32> -> vector<22x128xf32>
    %c0_3 = arith.constant 0 : index
    %c0_4 = arith.constant 0 : index
    %3 = vector.load %arg3[%c0_3, %c0_4] : memref<22x1xf32, #tpu.memory_space<vmem>>, vector<22x1xf32>
    %4 = vector.broadcast %3 : vector<22x1xf32> to vector<22x128xf32>
    %5 = arith.addf %2, %4 : vector<22x128xf32>
    %cst_5 = arith.constant 0.000000e+00 : f32
    %6 = vector.broadcast %cst_5 : f32 to vector<22x128xf32>
    %7 = arith.maximumf %5, %6 : vector<22x128xf32>
    %c0_6 = arith.constant 0 : index
    %c0_7 = arith.constant 0 : index
    %8 = vector.load %arg4[%c0_6, %c0_7] : memref<10x22xf32, #tpu.memory_space<vmem>>, vector<10x22xf32>
    %cst_8 = arith.constant dense<0.000000e+00> : vector<10x128xf32>
    %9 = tpu.matmul %8, %7, %cst_8 {dimension_numbers = #tpu.dot_dimension_numbers<[1], [0], [0], [1], [0, 0, 1, 1], [], []>} : vector<10x22xf32>, vector<22x128xf32>, vector<10x128xf32> -> vector<10x128xf32>
    %c0_9 = arith.constant 0 : index
    %c0_10 = arith.constant 0 : index
    %10 = vector.load %arg5[%c0_9, %c0_10] : memref<10x1xf32, #tpu.memory_space<vmem>>, vector<10x1xf32>
    %11 = vector.broadcast %10 : vector<10x1xf32> to vector<10x128xf32>
    %12 = arith.addf %9, %11 : vector<10x128xf32>
    %cst_11 = arith.constant 0.000000e+00 : f32
    %13 = vector.broadcast %cst_11 : f32 to vector<10x128xf32>
    %14 = arith.maximumf %12, %13 : vector<10x128xf32>
    %c0_12 = arith.constant 0 : index
    %c0_13 = arith.constant 0 : index
    %15 = vector.load %arg6[%c0_12, %c0_13] : memref<1x10xf32, #tpu.memory_space<vmem>>, vector<1x10xf32>
    %cst_14 = arith.constant dense<0.000000e+00> : vector<1x128xf32>
    %16 = tpu.matmul %15, %14, %cst_14 {dimension_numbers = #tpu.dot_dimension_numbers<[1], [0], [0], [1], [0, 0, 1, 1], [], []>} : vector<1x10xf32>, vector<10x128xf32>, vector<1x128xf32> -> vector<1x128xf32>
    %c0_15 = arith.constant 0 : index
    %c0_16 = arith.constant 0 : index
    %17 = vector.load %arg7[%c0_15, %c0_16] : memref<1x1xf32, #tpu.memory_space<vmem>>, vector<1x1xf32>
    %18 = vector.broadcast %17 : vector<1x1xf32> to vector<1x128xf32>
    %19 = arith.addf %16, %18 : vector<1x128xf32>
    %c0_17 = arith.constant 0 : index
    %c0_18 = arith.constant 0 : index
    %20 = vector.load %arg8[%c0_17, %c0_18] : memref<1x128xf32, #tpu.memory_space<vmem>>, vector<1x128xf32>
    tpu.vector_store %arg8[%c0_17, %c0_18], %19 {strides = array<i32>} : memref<1x128xf32, #tpu.memory_space<vmem>>, vector<1x128xf32>,
    return
  }
  func.func @transform_0(%arg0: i32) -> (i32, i32) {
    %c0_i32 = arith.constant 0 : i32
    %c0_i32_0 = arith.constant 0 : i32
    return %c0_i32, %arg0 : i32, i32
  }
  func.func @transform_1(%arg0: i32) -> (i32, i32) {
    %c0_i32 = arith.constant 0 : i32
    %c0_i32_0 = arith.constant 0 : i32
    %c0_i32_1 = arith.constant 0 : i32
    return %c0_i32, %c0_i32_0 : i32, i32
  }
  func.func @transform_2(%arg0: i32) -> (i32, i32) {
    %c0_i32 = arith.constant 0 : i32
    %c0_i32_0 = arith.constant 0 : i32
    %c0_i32_1 = arith.constant 0 : i32
    return %c0_i32, %c0_i32_0 : i32, i32
  }
  func.func @transform_3(%arg0: i32) -> (i32, i32) {
    %c0_i32 = arith.constant 0 : i32
    %c0_i32_0 = arith.constant 0 : i32
    %c0_i32_1 = arith.constant 0 : i32
    return %c0_i32, %c0_i32_0 : i32, i32
  }
  func.func @transform_4(%arg0: i32) -> (i32, i32) {
    %c0_i32 = arith.constant 0 : i32
    %c0_i32_0 = arith.constant 0 : i32
    %c0_i32_1 = arith.constant 0 : i32
    return %c0_i32, %c0_i32_0 : i32, i32
  }
  func.func @transform_5(%arg0: i32) -> (i32, i32) {
    %c0_i32 = arith.constant 0 : i32
    %c0_i32_0 = arith.constant 0 : i32
    %c0_i32_1 = arith.constant 0 : i32
    return %c0_i32, %c0_i32_0 : i32, i32
  }
  func.func @transform_6(%arg0: i32) -> (i32, i32) {
    %c0_i32 = arith.constant 0 : i32
    %c0_i32_0 = arith.constant 0 : i32
    %c0_i32_1 = arith.constant 0 : i32
    return %c0_i32, %c0_i32_0 : i32, i32
  }
  func.func @transform_7(%arg0: i32) -> (i32, i32) {
    %c0_i32 = arith.constant 0 : i32
    %c0_i32_0 = arith.constant 0 : i32
    return %c0_i32, %arg0 : i32, i32
  }
}

</mosaic_0001>

<llo_original>
// kernel: _net_forward_impl.1
$region0: #{_net_forward_impl.1}
  #allocation0 [shape = 'u32[]', space=smem, size = 0x4, offset = 0x4, fixed_abs, tag = 'smem constant byte address 0x4 - core index']
  #allocation1 [shape = 'u32[144,128]{1,0:T(1,128)}', space=vmem, size = 0x12000, scoped, tag = 'internal scratch']
  #allocation2 [shape = 'f32[1,1]{1,0:T(1,128)S(1)}', space=vmem, size = 0x200, scoped, tag = 'scoped memory for _net_forward_impl.1']
  %s0 = inlined_call_operand.vmem [shape: f32[11,128], index: 0, kind: input, shape index: {}]
  %s1 = inlined_call_operand.vmem [shape: f32[22,11], index: 1, kind: input, shape index: {}]
  %s2 = inlined_call_operand.vmem [shape: f32[22,1], index: 2, kind: input, shape index: {}]
  %s3 = inlined_call_operand.vmem [shape: f32[10,22], index: 3, kind: input, shape index: {}]
  %s4 = inlined_call_operand.vmem [shape: f32[10,1], index: 4, kind: input, shape index: {}]
  %s5 = inlined_call_operand.vmem [shape: f32[1,10], index: 5, kind: input, shape index: {}]
  %s6 = inlined_call_operand.<no memory space> [shape: f32[1,1], index: 6, kind: input, shape index: {}]
  %s7 = inlined_call_operand.vmem [shape: f32[1,128], index: 7, kind: output, shape index: {}]
  %s8 = sld [smem:[#allocation0]]
  $region38: #{_net_forward_impl.1} parent=0
    _
  %s10 = ssub.s32 1, %s8
  %s11 = scalar_select 0, %s10, %s8
  %v12 = vstv %s6
  %13 = vst [vmem:[#allocation2] sm:$0x1] %v12
  // Predicated region
  $region2: #{_net_forward_impl.1} parent=0 // pred_check
    _
  $region3: #{_net_forward_impl.1} parent=0 // pred_check_branch
    %15 = sbr.rel (0) target = $region5
  $region4: #{_net_forward_impl.1} parent=0 // pred_region
    _
  $region5: #{_net_forward_impl.1} parent=0 // pred_fallthru
    _
  // Predicated region
  $region6: #{_net_forward_impl.1} parent=0 // pred_check
    _
  $region7: #{_net_forward_impl.1} parent=0 // pred_check_branch
    %17 = sbr.rel (0) target = $region9
  $region8: #{_net_forward_impl.1} parent=0 // pred_region
    _
  $region9: #{_net_forward_impl.1} parent=0 // pred_fallthru
    _
  // Predicated region
  $region10: #{_net_forward_impl.1} parent=0 // pred_check
    _
  $region11: #{_net_forward_impl.1} parent=0 // pred_check_branch
    %19 = sbr.rel (0) target = $region13
  $region12: #{_net_forward_impl.1} parent=0 // pred_region
    _
  $region13: #{_net_forward_impl.1} parent=0 // pred_fallthru
    _
  // Predicated region
  $region14: #{_net_forward_impl.1} parent=0 // pred_check
    _
  $region15: #{_net_forward_impl.1} parent=0 // pred_check_branch
    %21 = sbr.rel (0) target = $region17
  $region16: #{_net_forward_impl.1} parent=0 // pred_region
    _
  $region17: #{_net_forward_impl.1} parent=0 // pred_fallthru
    _
  // Predicated region
  $region18: #{_net_forward_impl.1} parent=0 // pred_check
    _
  $region19: #{_net_forward_impl.1} parent=0 // pred_check_branch
    %23 = sbr.rel (0) target = $region21
  $region20: #{_net_forward_impl.1} parent=0 // pred_region
    _
  $region21: #{_net_forward_impl.1} parent=0 // pred_fallthru
    _
  // Predicated region
  $region22: #{_net_forward_impl.1} parent=0 // pred_check
    _
  $region23: #{_net_forward_impl.1} parent=0 // pred_check_branch
    %25 = sbr.rel (0) target = $region25
  $region24: #{_net_forward_impl.1} parent=0 // pred_region
    _
  $region25: #{_net_forward_impl.1} parent=0 // pred_fallthru
    _
  // Predicated region
  $region26: #{_net_forward_impl.1} parent=0 // pred_check
    _
  $region27: #{_net_forward_impl.1} parent=0 // pred_check_branch
    %27 = sbr.rel (0) target = $region29
  $region28: #{_net_forward_impl.1} parent=0 // pred_region
    _
  $region29: #{_net_forward_impl.1} parent=0 // pred_fallthru
    _
  %v28 = vld [vmem:[%s0] sm:$0xff]
  %v29 = vld [vmem:[%s0 + $0x8] sm:$0x7]
  %v30 = vld [vmem:[%s1] sm:$0xff]
  %v31 = vld [vmem:[%s1 + $0x8] sm:$0xff]
  %v32 = vld [vmem:[%s1 + $0x10] sm:$0x3f]
  %v33 = vld [vmem:[%s2] sm:$0xff]
  %v34 = vld [vmem:[%s2 + $0x8] sm:$0xff]
  %v35 = vld [vmem:[%s2 + $0x10] sm:$0x3f]
  %37 = vset.pattern.permute.xlu0 0
  %38 = vperm.xlu0 %37, %v33
  %v39 = vpop.permute.xlu0 %38
  %42 = vset.pattern.permute.xlu0 0
  %43 = vperm.xlu0 %42, %v34
  %v44 = vpop.permute.xlu0 %43
  %47 = vset.pattern.permute.xlu0 0
  %48 = vperm.xlu0 %47, %v35
  %v49 = vpop.permute.xlu0 %48
  %vm51 = vcmask 89088
  %v53 = vsel %vm51, %v30, 0
  %v56 = vsel %vm51, %v31, 0
  %v59 = vsel %vm51, %v32, 0
  %vm61 = vcmask 1042432
  %v63 = vsel %vm61, %v29, 0
  %65 = vmatprep.subr.mxu0 0.0
  %66 = vmatpush1.msra.mxu0 %v28
  %67 = vmatprep.subr.mxu0 0.0
  %68 = vmatpush1.msra.mxu0 %v63
  %69 = vmatprep.subr.mxu0 0.0
  %70 = vmatpush1.msra.mxu0 0.0
  %71 = vmatprep.subr.mxu0 0.0
  %72 = vmatpush1.msra.mxu0 0.0
  %73 = vmatprep.subr.mxu0 0.0
  %74 = vmatpush1.msra.mxu0 0.0
  %75 = vmatprep.subr.mxu0 0.0
  %76 = vmatpush1.msra.mxu0 0.0
  %77 = vmatprep.subr.mxu0 0.0
  %78 = vmatpush1.msra.mxu0 0.0
  %79 = vmatprep.subr.mxu0 0.0
  %80 = vmatpush1.msra.mxu0 0.0
  %81 = vmatprep.subr.mxu0 0.0
  %82 = vmatpush1.msra.mxu0 0.0
  %83 = vmatprep.subr.mxu0 0.0
  %84 = vmatpush1.msra.mxu0 0.0
  %85 = vmatprep.subr.mxu0 0.0
  %86 = vmatpush1.msra.mxu0 0.0
  %87 = vmatprep.subr.mxu0 0.0
  %88 = vmatpush1.msra.mxu0 0.0
  %89 = vmatprep.subr.mxu0 0.0
  %90 = vmatpush1.msra.mxu0 0.0
  %91 = vmatprep.subr.mxu0 0.0
  %92 = vmatpush1.msra.mxu0 0.0
  %93 = vmatprep.subr.mxu0 0.0
  %94 = vmatpush1.msra.mxu0 0.0
  %95 = vmatprep.subr.mxu0 0.0
  %96 = vmatpush1.msra.mxu0 0.0
  %97 = vmatprep.subr.mxu0 0.0
  %98 = vmatpush1.msra.mxu0 0.0
  %99 = vmatprep.subr.mxu0 0.0
  %100 = vmatpush1.msra.mxu0 0.0
  %101 = vmatprep.subr.mxu0 0.0
  %102 = vmatpush1.msra.mxu0 0.0
  %103 = vmatprep.subr.mxu0 0.0
  %104 = vmatpush1.msra.mxu0 0.0
  %105 = vmatprep.subr.mxu0 0.0
  %106 = vmatpush1.msra.mxu0 0.0
  %107 = vmatprep.subr.mxu0 0.0
  %108 = vmatpush1.msra.mxu0 0.0
  %109 = vmatprep.subr.mxu0 0.0
  %110 = vmatpush1.msra.mxu0 0.0
  %111 = vmatprep.subr.mxu0 0.0
  %112 = vmatpush1.msra.mxu0 0.0
  %113 = vmatprep.subr.mxu0 0.0
  %114 = vmatpush1.msra.mxu0 0.0
  %115 = vmatprep.subr.mxu0 0.0
  %116 = vmatpush1.msra.mxu0 0.0
  %117 = vmatprep.subr.mxu0 0.0
  %118 = vmatpush1.msra.mxu0 0.0
  %119 = vmatprep.subr.mxu0 0.0
  %120 = vmatpush1.msra.mxu0 0.0
  %121 = vmatprep.subr.mxu0 0.0
  %122 = vmatpush1.msra.mxu0 0.0
  %123 = vmatprep.subr.mxu0 0.0
  %124 = vmatpush1.msra.mxu0 0.0
  %125 = vmatprep.subr.mxu0 0.0
  %126 = vmatpush1.msra.mxu0 0.0
  %127 = vmatprep.subr.mxu0 0.0
  %128 = vmatpush1.msra.mxu0 0.0
  %129 = vmatprep.mubr.f32.mxu0 0.0
  %130 = vmatmul.mubr.f32.gmra.mrb[0].mxu0 %v53
  %v131 = vpop.f32.mrb[0].mxu0
  %v132 = vadd.f32 %v39, %v131
  %v133 = vpop.f32.mrb[0].mxu0
  %134 = vmatprep.mubr.f32.mxu0 0.0
  %135 = vmatmul.mubr.f32.gmra.mrb[0].mxu0 %v56
  %v136 = vpop.f32.mrb[0].mxu0
  %v137 = vadd.f32 %v44, %v136
  %v138 = vpop.f32.mrb[0].mxu0
  %139 = vmatprep.mubr.f32.mxu0 0.0
  %140 = vmatmul.mubr.f32.gmra.mrb[0].mxu0 %v59
  %v141 = vpop.f32.mrb[0].mxu0
  %v142 = vadd.f32 %v49, %v141
  %v143 = vpop.f32.mrb[0].mxu0
  %144 = vdwg.mxu0
  %v145 = vmax.f32 %v132, 0.0
  %v146 = vmax.f32 %v137, 0.0
  %v147 = vmax.f32 %v142, 0.0
  %v148 = vld [vmem:[%s3] sm:$0xff]
  %v149 = vld [vmem:[%s3 + $0x8] sm:$0x3]
  %v150 = vld [vmem:[%s4] sm:$0xff]
  %v151 = vld [vmem:[%s4 + $0x8] sm:$0x3]
  %153 = vset.pattern.permute.xlu0 0
  %154 = vperm.xlu0 %153, %v150
  %v155 = vpop.permute.xlu0 %154
  %158 = vset.pattern.permute.xlu0 0
  %159 = vperm.xlu0 %158, %v151
  %v160 = vpop.permute.xlu0 %159
  %vm162 = vcmask 179200
  %v164 = vsel %vm162, %v148, 0
  %v167 = vsel %vm162, %v149, 0
  %vm169 = vcmask 1045504
  %v171 = vsel %vm169, %v147, 0
  %173 = vmatprep.subr.mxu0 0.0
  %174 = vmatpush1.msra.mxu0 %v145
  %175 = vmatprep.subr.mxu0 0.0
  %176 = vmatpush1.msra.mxu0 %v146
  %177 = vmatprep.subr.mxu0 0.0
  %178 = vmatpush1.msra.mxu0 %v171
  %179 = vmatprep.subr.mxu0 0.0
  %180 = vmatpush1.msra.mxu0 0.0
  %181 = vmatprep.subr.mxu0 0.0
  %182 = vmatpush1.msra.mxu0 0.0
  %183 = vmatprep.subr.mxu0 0.0
  %184 = vmatpush1.msra.mxu0 0.0
  %185 = vmatprep.subr.mxu0 0.0
  %186 = vmatpush1.msra.mxu0 0.0
  %187 = vmatprep.subr.mxu0 0.0
  %188 = vmatpush1.msra.mxu0 0.0
  %189 = vmatprep.subr.mxu0 0.0
  %190 = vmatpush1.msra.mxu0 0.0
  %191 = vmatprep.subr.mxu0 0.0
  %192 = vmatpush1.msra.mxu0 0.0
  %193 = vmatprep.subr.mxu0 0.0
  %194 = vmatpush1.msra.mxu0 0.0
  %195 = vmatprep.subr.mxu0 0.0
  %196 = vmatpush1.msra.mxu0 0.0
  %197 = vmatprep.subr.mxu0 0.0
  %198 = vmatpush1.msra.mxu0 0.0
  %199 = vmatprep.subr.mxu0 0.0
  %200 = vmatpush1.msra.mxu0 0.0
  %201 = vmatprep.subr.mxu0 0.0
  %202 = vmatpush1.msra.mxu0 0.0
  %203 = vmatprep.subr.mxu0 0.0
  %204 = vmatpush1.msra.mxu0 0.0
  %205 = vmatprep.subr.mxu0 0.0
  %206 = vmatpush1.msra.mxu0 0.0
  %207 = vmatprep.subr.mxu0 0.0
  %208 = vmatpush1.msra.mxu0 0.0
  %209 = vmatprep.subr.mxu0 0.0
  %210 = vmatpush1.msra.mxu0 0.0
  %211 = vmatprep.subr.mxu0 0.0
  %212 = vmatpush1.msra.mxu0 0.0
  %213 = vmatprep.subr.mxu0 0.0
  %214 = vmatpush1.msra.mxu0 0.0
  %215 = vmatprep.subr.mxu0 0.0
  %216 = vmatpush1.msra.mxu0 0.0
  %217 = vmatprep.subr.mxu0 0.0
  %218 = vmatpush1.msra.mxu0 0.0
  %219 = vmatprep.subr.mxu0 0.0
  %220 = vmatpush1.msra.mxu0 0.0
  %221 = vmatprep.subr.mxu0 0.0
  %222 = vmatpush1.msra.mxu0 0.0
  %223 = vmatprep.subr.mxu0 0.0
  %224 = vmatpush1.msra.mxu0 0.0
  %225 = vmatprep.subr.mxu0 0.0
  %226 = vmatpush1.msra.mxu0 0.0
  %227 = vmatprep.subr.mxu0 0.0
  %228 = vmatpush1.msra.mxu0 0.0
  %229 = vmatprep.subr.mxu0 0.0
  %230 = vmatpush1.msra.mxu0 0.0
  %231 = vmatprep.subr.mxu0 0.0
  %232 = vmatpush1.msra.mxu0 0.0
  %233 = vmatprep.subr.mxu0 0.0
  %234 = vmatpush1.msra.mxu0 0.0
  %235 = vmatprep.subr.mxu0 0.0
  %236 = vmatpush1.msra.mxu0 0.0
  %237 = vmatprep.mubr.f32.mxu0 0.0
  %238 = vmatmul.mubr.f32.gmra.mrb[0].mxu0 %v164
  %v239 = vpop.f32.mrb[0].mxu0
  %v240 = vadd.f32 %v155, %v239
  %v241 = vpop.f32.mrb[0].mxu0
  %242 = vmatprep.mubr.f32.mxu0 0.0
  %243 = vmatmul.mubr.f32.gmra.mrb[0].mxu0 %v167
  %v244 = vpop.f32.mrb[0].mxu0
  %v245 = vadd.f32 %v160, %v244
  %v246 = vpop.f32.mrb[0].mxu0
  %247 = vdwg.mxu0
  %v248 = vmax.f32 %v240, 0.0
  %v249 = vmax.f32 %v245, 0.0
  %v250 = vld [vmem:[%s5] sm:$0x1]
  %v251 = vld [vmem:[#allocation2] sm:$0x1]
  %253 = vset.pattern.permute.xlu0 0
  %254 = vperm.xlu0 %253, %v251
  %v255 = vpop.permute.xlu0 %254
  %v257 = vlaneseq
  %v258 = vshrl.u32 %v257, 7
  %v259 = vsub.s32 0, %v258
  %v260 = vrot.slane %v255, %v259
  %vm261 = vcmask 80896
  %v263 = vsel %vm261, %v250, 0
  %vm265 = vcmask 1041408
  %v267 = vsel %vm265, %v249, 0
  %269 = vmatprep.subr.mxu0 0.0
  %270 = vmatpush1.msra.mxu0 %v248
  %271 = vmatprep.subr.mxu0 0.0
  %272 = vmatpush1.msra.mxu0 %v267
  %273 = vmatprep.subr.mxu0 0.0
  %274 = vmatpush1.msra.mxu0 0.0
  %275 = vmatprep.subr.mxu0 0.0
  %276 = vmatpush1.msra.mxu0 0.0
  %277 = vmatprep.subr.mxu0 0.0
  %278 = vmatpush1.msra.mxu0 0.0
  %279 = vmatprep.subr.mxu0 0.0
  %280 = vmatpush1.msra.mxu0 0.0
  %281 = vmatprep.subr.mxu0 0.0
  %282 = vmatpush1.msra.mxu0 0.0
  %283 = vmatprep.subr.mxu0 0.0
  %284 = vmatpush1.msra.mxu0 0.0
  %285 = vmatprep.subr.mxu0 0.0
  %286 = vmatpush1.msra.mxu0 0.0
  %287 = vmatprep.subr.mxu0 0.0
  %288 = vmatpush1.msra.mxu0 0.0
  %289 = vmatprep.subr.mxu0 0.0
  %290 = vmatpush1.msra.mxu0 0.0
  %291 = vmatprep.subr.mxu0 0.0
  %292 = vmatpush1.msra.mxu0 0.0
  %293 = vmatprep.subr.mxu0 0.0
  %294 = vmatpush1.msra.mxu0 0.0
  %295 = vmatprep.subr.mxu0 0.0
  %296 = vmatpush1.msra.mxu0 0.0
  %297 = vmatprep.subr.mxu0 0.0
  %298 = vmatpush1.msra.mxu0 0.0
  %299 = vmatprep.subr.mxu0 0.0
  %300 = vmatpush1.msra.mxu0 0.0
  %301 = vmatprep.subr.mxu0 0.0
  %302 = vmatpush1.msra.mxu0 0.0
  %303 = vmatprep.subr.mxu0 0.0
  %304 = vmatpush1.msra.mxu0 0.0
  %305 = vmatprep.subr.mxu0 0.0
  %306 = vmatpush1.msra.mxu0 0.0
  %307 = vmatprep.subr.mxu0 0.0
  %308 = vmatpush1.msra.mxu0 0.0
  %309 = vmatprep.subr.mxu0 0.0
  %310 = vmatpush1.msra.mxu0 0.0
  %311 = vmatprep.subr.mxu0 0.0
  %312 = vmatpush1.msra.mxu0 0.0
  %313 = vmatprep.subr.mxu0 0.0
  %314 = vmatpush1.msra.mxu0 0.0
  %315 = vmatprep.subr.mxu0 0.0
  %316 = vmatpush1.msra.mxu0 0.0
  %317 = vmatprep.subr.mxu0 0.0
  %318 = vmatpush1.msra.mxu0 0.0
  %319 = vmatprep.subr.mxu0 0.0
  %320 = vmatpush1.msra.mxu0 0.0
  %321 = vmatprep.subr.mxu0 0.0
  %322 = vmatpush1.msra.mxu0 0.0
  %323 = vmatprep.subr.mxu0 0.0
  %324 = vmatpush1.msra.mxu0 0.0
  %325 = vmatprep.subr.mxu0 0.0
  %326 = vmatpush1.msra.mxu0 0.0
  %327 = vmatprep.subr.mxu0 0.0
  %328 = vmatpush1.msra.mxu0 0.0
  %329 = vmatprep.subr.mxu0 0.0
  %330 = vmatpush1.msra.mxu0 0.0
  %331 = vmatprep.subr.mxu0 0.0
  %332 = vmatpush1.msra.mxu0 0.0
  %333 = vmatprep.mubr.f32.mxu0 0.0
  %334 = vmatmul.mubr.f32.gmra.mrb[0].mxu0 %v263
  %v335 = vpop.f32.mrb[0].mxu0
  %v336 = vadd.f32 %v260, %v335
  %v337 = vpop.f32.mrb[0].mxu0
  %338 = vdwg.mxu0
  %339 = vst [vmem:[%s7] sm:$0x1] %v336
  // Predicated region
  $region30: #{_net_forward_impl.1} parent=0 // pred_check
    _
  $region31: #{_net_forward_impl.1} parent=0 // pred_check_branch
    %341 = sbr.rel (0) target = $region33
  $region32: #{_net_forward_impl.1} parent=0 // pred_region
    _
  $region33: #{_net_forward_impl.1} parent=0 // pred_fallthru
    _
  // Predicated region
  $region34: #{_net_forward_impl.1} parent=0 // pred_check
    _
  $region35: #{_net_forward_impl.1} parent=0 // pred_check_branch
    %343 = sbr.rel (0) target = $region37
  $region36: #{_net_forward_impl.1} parent=0 // pred_region
    _
  $region37: #{_net_forward_impl.1} parent=0 // pred_fallthru
    _

</llo_original>
